<compile_context>
chip_gen: v5e
topology: v5e:2x2
jax: 0.10.0
libtpu: 0.0.40
codegen_flags: <defaults>
</compile_context>

<pallas_src>
import functools

import jax
import jax.numpy as jnp
from jax.experimental import pallas as pl
from jax.experimental.pallas import tpu as pltpu


def _round_up(a, b):
    return -(-a // b) * b


def _focal_partial_kernel(logits_ref, target_ref, out_ref, *, n_total, tile_n):
    """Writes this tile's summed NLL (softmax cross-entropy) into out_ref[0, 0]."""
    i = pl.program_id(0)

    x = logits_ref[...].astype(jnp.float32)          # (TN, C) f32 (upcast in VMEM)
    t = target_ref[...]                              # (TN, 1) int32

    # Fused log-softmax pieces: logsumexp and the logit at the target class.
    m = jnp.max(x, axis=-1, keepdims=True)                                 # (TN, 1)
    lse = jnp.log(jnp.sum(jnp.exp(x - m), axis=-1, keepdims=True)) + m     # (TN, 1)
    cls = jax.lax.broadcasted_iota(jnp.int32, x.shape, 1)                  # (TN, C)
    tgt_logit = jnp.sum(jnp.where(cls == t, x, 0.0), axis=-1, keepdims=True)

    # Mask padded rows of the (possibly partial) remainder tile.  jnp.where
    # also kills any NaN/Inf coming from stale VMEM in those rows.
    rows = jax.lax.broadcasted_iota(jnp.int32, (tile_n, 1), 0) + i * tile_n
    nll = jnp.where(rows < n_total, lse - tgt_logit, 0.0)                  # (TN, 1)

    out_ref[0, 0] = jnp.sum(nll)


def _pick_tile_n(n, c, itemsize, sub,
                 target_block_bytes=4 * 1024 * 1024, max_rows=2048):
    """Rows per tile: ~4 MiB logits block, multiple of `sub`, sensibly capped."""
    rows = (target_block_bytes // max(1, c * itemsize)) // sub * sub
    rows = max(sub, min(rows, max_rows))
    rows = min(rows, _round_up(n, sub))
    return int(rows)


def focal_loss(logits, target, gamma=2.0, tile_n=None):
    """logits: (N, C) float; target: (N,) integer class ids. Returns scalar f32."""
    n, c = logits.shape
    itemsize = jnp.dtype(logits.dtype).itemsize
    sub = max(8, 32 // itemsize)          # sublane multiple: f32->8, bf16->16, int8->32

    if tile_n is None:
        tile_n = _pick_tile_n(n, c, itemsize, sub)
    else:
        tile_n = int(_round_up(int(tile_n), sub))

    num_tiles = _round_up(n, tile_n) // tile_n
    target2d = target.astype(jnp.int32).reshape(n, 1)

    kernel = functools.partial(_focal_partial_kernel, n_total=n, tile_n=tile_n)

    cost = pl.CostEstimate(
        flops=int(6 * n * c),
        transcendentals=int(n * c),
        bytes_accessed=int(n * c * itemsize + n * 4 + num_tiles * 4),
    )

    partials = pl.pallas_call(
        kernel,
        out_shape=jax.ShapeDtypeStruct((num_tiles, 1), jnp.float32),
        grid_spec=pltpu.PrefetchScalarGridSpec(
            num_scalar_prefetch=0,
            grid=(num_tiles,),
            in_specs=[
                pl.BlockSpec((tile_n, c), lambda i: (i, 0)),
                pl.BlockSpec((tile_n, 1), lambda i: (i, 0)),
            ],
            out_specs=pl.BlockSpec((1, 1), lambda i: (i, 0),
                                   memory_space=pltpu.SMEM),
        ),
        compiler_params=pltpu.CompilerParams(
            dimension_semantics=("parallel",),
            vmem_limit_bytes=32 * 1024 * 1024,
        ),
        cost_estimate=cost,
    )(logits, target2d)

    # Tiny scalar epilogue: mean CE + focal transform.
    logp = jnp.sum(partials) / jnp.float32(n)
    p = jnp.exp(-logp)
    return ((1.0 - p) ** jnp.float32(gamma)) * logp


def _focal_loss_ref(logits, target, gamma=2.0):
    x = logits.astype(jnp.float32)
    lse = jax.scipy.special.logsumexp(x, axis=-1)
    tgt = jnp.take_along_axis(x, target[:, None].astype(jnp.int32), axis=-1)[:, 0]
    logp = jnp.mean(lse - tgt)
    p = jnp.exp(-logp)
    return ((1.0 - p) ** gamma) * logp


if __name__ == "__main__":
    key = jax.random.PRNGKey(0)
    k1, k2, k3, k4 = jax.random.split(key, 4)

    # Small shapes consistent with a classification loss: batch=8, classes=32.
    N, C = 8, 32
    logits = jax.random.normal(k1, (N, C), dtype=jnp.float32)
    target = jax.random.randint(k2, (N,), 0, C, dtype=jnp.int32)

    loss = jax.block_until_ready(focal_loss(logits, target, gamma=2.0))
    ref = _focal_loss_ref(logits, target, gamma=2.0)
    assert jnp.allclose(loss, ref, rtol=1e-5, atol=1e-5), (loss, ref)

    # Exercise the cdiv + remainder-masking path (N not divisible by tile_n).
    N2 = 24
    logits2 = jax.random.normal(k3, (N2, C), dtype=jnp.float32)
    target2 = jax.random.randint(k4, (N2,), 0, C, dtype=jnp.int32)
    loss2 = jax.block_until_ready(focal_loss(logits2, target2, gamma=2.0, tile_n=16))
    ref2 = _focal_loss_ref(logits2, target2, gamma=2.0)
    assert jnp.allclose(loss2, ref2, rtol=1e-5, atol=1e-5), (loss2, ref2)

    print("KERNEL_OK")
</pallas_src>

<mosaic_0001>
module attributes {stable_mosaic.version = 11 : i64} {
  func.func @_focal_partial_kernel(%arg0: i32, %arg1: memref<8x32xf32, #tpu.memory_space<vmem>>, %arg2: memref<8x1xi32, #tpu.memory_space<vmem>>, %arg3: memref<1x1xf32, #tpu.memory_space<smem>>) attributes {dimension_semantics = [#tpu.dimension_semantics<parallel>], iteration_bounds = array<i64: 1>, scalar_prefetch = 0 : i64, scratch_operands = 0 : i64, tpu.core_type = #tpu.core_type<tc>, window_params = [{transform_indices = @transform_0, window_bounds = array<i64: 8, 32>}, {transform_indices = @transform_1, window_bounds = array<i64: 8, 1>}, {transform_indices = @transform_2, window_bounds = array<i64: 1, 1>}]} {
    %c0 = arith.constant 0 : index
    %c0_0 = arith.constant 0 : index
    %0 = vector.load %arg1[%c0, %c0_0] : memref<8x32xf32, #tpu.memory_space<vmem>>, vector<8x32xf32>
    %c0_1 = arith.constant 0 : index
    %c0_2 = arith.constant 0 : index
    %1 = vector.load %arg2[%c0_1, %c0_2] : memref<8x1xi32, #tpu.memory_space<vmem>>, vector<8x1xi32>
    %cst = arith.constant dense<0xFF800000> : vector<8xf32>
    %2 = vector.multi_reduction <maximumf>, %0, %cst [1] : vector<8x32xf32> to vector<8xf32>
    %3 = vector.shape_cast %2 : vector<8xf32> to vector<8x1xf32>
    %4 = vector.broadcast %3 : vector<8x1xf32> to vector<8x32xf32>
    %5 = arith.subf %0, %4 : vector<8x32xf32>
    %6 = math.exp %5 : vector<8x32xf32>
    %cst_3 = arith.constant dense<0.000000e+00> : vector<8xf32>
    %7 = vector.multi_reduction <add>, %6, %cst_3 [1] : vector<8x32xf32> to vector<8xf32>
    %8 = vector.shape_cast %7 : vector<8xf32> to vector<8x1xf32>
    %9 = math.log %8 : vector<8x1xf32>
    %10 = arith.addf %9, %3 : vector<8x1xf32>
    %11 = tpu.iota {dimensions = array<i32: 1>} : vector<8x32xi32>
    %12 = vector.broadcast %1 : vector<8x1xi32> to vector<8x32xi32>
    %13 = arith.cmpi eq, %11, %12 : vector<8x32xi32>
    %cst_4 = arith.constant 0.000000e+00 : f32
    %14 = vector.broadcast %cst_4 : f32 to vector<8x32xf32>
    %15 = arith.select %13, %0, %14 : vector<8x32xi1>, vector<8x32xf32>
    %cst_5 = arith.constant dense<0.000000e+00> : vector<8xf32>
    %16 = vector.multi_reduction <add>, %15, %cst_5 [1] : vector<8x32xf32> to vector<8xf32>
    %17 = vector.shape_cast %16 : vector<8xf32> to vector<8x1xf32>
    %18 = tpu.iota {dimensions = array<i32: 0>} : vector<8x1xi32>
    %c8_i32 = arith.constant 8 : i32
    %19 = arith.muli %arg0, %c8_i32 : i32
    %20 = vector.broadcast %19 : i32 to vector<8x1xi32>
    %21 = arith.addi %18, %20 : vector<8x1xi32>
    %c8_i32_6 = arith.constant 8 : i32
    %22 = vector.broadcast %c8_i32_6 : i32 to vector<8x1xi32>
    %23 = arith.cmpi slt, %21, %22 : vector<8x1xi32>
    %24 = arith.subf %10, %17 : vector<8x1xf32>
    %cst_7 = arith.constant 0.000000e+00 : f32
    %25 = vector.broadcast %cst_7 : f32 to vector<8x1xf32>
    %26 = arith.select %23, %24, %25 : vector<8x1xi1>, vector<8x1xf32>
    %27 = vector.shape_cast %26 : vector<8x1xf32> to vector<1x8x1xf32>
    %cst_8 = arith.constant dense<0.000000e+00> : vector<1xf32>
    %28 = vector.multi_reduction <add>, %27, %cst_8 [1, 2] : vector<1x8x1xf32> to vector<1xf32>
    %29 = vector.shape_cast %28 : vector<1xf32> to vector<1x1x1xf32>
    %30 = vector.extract %29[0, 0, 0] : f32 from vector<1x1x1xf32>
    %c0_9 = arith.constant 0 : index
    %c0_10 = arith.constant 0 : index
    %31 = memref.load %arg3[%c0_9, %c0_10] : memref<1x1xf32, #tpu.memory_space<smem>>
    memref.store %30, %arg3[%c0_9, %c0_10] : memref<1x1xf32, #tpu.memory_space<smem>>
    return
  }
  func.func @transform_0(%arg0: i32) -> (i32, i32) {
    %c0_i32 = arith.constant 0 : i32
    %c0_i32_0 = arith.constant 0 : i32
    return %arg0, %c0_i32 : i32, i32
  }
  func.func @transform_1(%arg0: i32) -> (i32, i32) {
    %c0_i32 = arith.constant 0 : i32
    %c0_i32_0 = arith.constant 0 : i32
    return %arg0, %c0_i32 : i32, i32
  }
  func.func @transform_2(%arg0: i32) -> (i32, i32) {
    %c0_i32 = arith.constant 0 : i32
    %c0_i32_0 = arith.constant 0 : i32
    return %arg0, %c0_i32 : i32, i32
  }
}

</mosaic_0001>

<llo_original>
// kernel: tpu_custom_call.1
$region0: #{tpu_custom_call.1}
  #allocation0 [shape = 'u32[]', space=smem, size = 0x4, offset = 0x4, fixed_abs, tag = 'smem constant byte address 0x4 - core index']
  #allocation1 [shape = 'u32[72,128]{1,0:T(1,128)}', space=vmem, size = 0x9000, scoped, tag = 'internal scratch']
  %s0 = inlined_call_operand.vmem [shape: f32[8,32], index: 0, kind: input, shape index: {}]
  %s1 = inlined_call_operand.vmem [shape: s32[8,1], index: 1, kind: input, shape index: {}]
  %s2 = inlined_call_operand.hbm [shape: f32[1,1], index: 2, kind: output, shape index: {}]
  %s3 = sld [smem:[#allocation0]]
  $region18: #{tpu_custom_call.1} parent=0
    _
  %s5 = ssub.s32 1, %s3
  %s6 = scalar_select 0, %s5, %s3
  $region1: #{tpu_custom_call.1} parent=0
    #allocation2 [shape = 'u8[512]{0}', space=smem, size = 0x200, scoped, tag = 'output window, operand 0, single buffered']
    #allocation3 [shape = 's32[1]{0}', space=sflag, size = 0x4, scoped, tag = 'scoped memory for tpu_custom_call.1']
    %7 = vsyncpa [#allocation3], 0
    // Predicated region
    $region2: #{tpu_custom_call.1} parent=1 // pred_check
      _
    $region3: #{tpu_custom_call.1} parent=1 // pred_check_branch
      %9 = sbr.rel (0) target = $region5
    $region4: #{tpu_custom_call.1} parent=1 // pred_region
      _
    $region5: #{tpu_custom_call.1} parent=1 // pred_fallthru
      _
    // Predicated region
    $region6: #{tpu_custom_call.1} parent=1 // pred_check
      _
    $region7: #{tpu_custom_call.1} parent=1 // pred_check_branch
      %11 = sbr.rel (0) target = $region9
    $region8: #{tpu_custom_call.1} parent=1 // pred_region
      _
    $region9: #{tpu_custom_call.1} parent=1 // pred_fallthru
      _
    %v12 = vld [vmem:[%s0] sm:$0xff]
    %v13 = vld [vmem:[%s1] sm:$0xff]
    %vm14 = vcmask 261120
    %v15 = vsel %vm14, %v12, -inf
    %16 = vmax.xlane.f32.xlu0 %v15
    %v17 = vpop.xlane.xlu0 %16
    %v18 = vsub.f32 %v12, %v17
    %v19 = vmul.f32 %v18, 1.442695
    %v20 = vpow.pop %v19
    %v21 = vsel %vm14, %v20, 0.0
    %22 = vadd.xlane.f32.xlu0 %v21
    %v23 = vpop.xlane.xlu0 %22
    %v24 = vlog2.pop %v23
    %v25 = vmul.f32 %v24, 0.6931472
    %v26 = vadd.f32 %v25, %v17
    %v27 = vlaneseq
    %v28 = vand.u32 %v27, 127
    %29 = vset.pattern.permute.xlu0 0
    %30 = vperm.xlu0 %29, %v13
    %v31 = vpop.permute.xlu0 %30
    %vm32 = vcmp.eq.s32.totalorder %v28, %v31
    %v33 = vsel %vm32, %v12, 0.0
    %v34 = vsel %vm14, %v33, 0.0
    %35 = vadd.xlane.f32.xlu0 %v34
    %v36 = vpop.xlane.xlu0 %35
    %v37 = vlaneseq
    %v38 = vshrl.u32 %v37, 7
    %s39 = smul.u32 0, 8
    %v40 = vstv %s39
    %v41 = vadd.s32 %v38, %v40
    %vm42 = vcmp.lt.s32.totalorder %v41, 8
    %v43 = vsub.f32 %v26, %v36
    %v44 = vsel %vm42, %v43, 0.0
    %vm45 = vcmask 7168
    %v46 = vsel %vm45, %v44, 0.0
    %47 = vadd.xlane.f32.xlu0 %v46
    %v48 = vpop.xlane.xlu0 %47
    %v49 = vrot.slane %v48, 4
    %v50 = vadd.f32 %v48, %v49
    %v51 = vrot.slane %v50, 2
    %v52 = vadd.f32 %v50, %v51
    %v53 = vrot.slane %v52, 1
    %v54 = vadd.f32 %v52, %v53
    %s55 = vtos %v54
    %s56 = scalar_lea.smem [#allocation2], 0
    %57 = sst [smem:[%s56]] %s55
    // Predicated region
    $region10: #{tpu_custom_call.1} parent=1 // pred_check
      _
    $region11: #{tpu_custom_call.1} parent=1 // pred_check_branch
      %59 = sbr.rel (0) target = $region13
    $region12: #{tpu_custom_call.1} parent=1 // pred_region
      %61 = vsyncadd [#allocation3], 0
      %s63 = sshll.u32 %s2, 4
      %s64 = int_to_ptr.hbm [resolvable:$true] %s63
      %66 = dma.smem_to_hbm [#allocation2], 16, %s64, [#allocation3]
    $region13: #{tpu_custom_call.1} parent=1 // pred_fallthru
      _
    // Predicated region
    $region14: #{tpu_custom_call.1} parent=1 // pred_check
      _
    $region15: #{tpu_custom_call.1} parent=1 // pred_check_branch
      %68 = sbr.rel (0) target = $region17
    $region16: #{tpu_custom_call.1} parent=1 // pred_region
      %70 = dma.done [#allocation3], 16
    $region17: #{tpu_custom_call.1} parent=1 // pred_fallthru
      _
    %71 = sfence
    %72 = vsyncpa [#allocation3], 1

</llo_original>
